<compile_context>
chip_gen: v6e
topology: v6e:2x2x1
jax: 0.10.0
libtpu: 0.0.40
codegen_flags: <defaults>
</compile_context>

<pallas_src>
import math
import numpy as np
import jax
import jax.numpy as jnp
from jax.experimental import pallas as pl
from jax.experimental.pallas import tpu as pltpu


# ----------------------------- kernels -----------------------------

def _make_fused_kernel(prim_relu6):
    """Cheap branch fully folded into the 1x1 conv (valid when no intermediate ReLU6)."""
    def kernel(p_ref, x2_ref, w1_ref, w2_ref, b_ref, o_ref):
        # p_ref : (1, 9*C1, TP)   im2col slab of x1, pixel axis lane-dense
        # x2_ref: (1, C2,  TP)
        # w1_ref: (OUP, 9*C1)     conv3x3 * BN1 * 1x1-conv * BN2, all folded
        # w2_ref: (OUP, C2)       1x1-conv rows for x2, BN2 scale folded
        # b_ref : (OUP, 1)        fused bias (f32)
        # o_ref : (1, OUP, TP)    lane-dense output block
        acc = jnp.dot(w1_ref[...], p_ref[0], preferred_element_type=jnp.float32)
        acc = acc + jnp.dot(w2_ref[...], x2_ref[0], preferred_element_type=jnp.float32)
        out = acc + b_ref[...]                       # f32 bias add
        if prim_relu6:
            out = jnp.clip(out, 0.0, 6.0)            # f32 clip
        o_ref[0] = out.astype(o_ref.dtype)
    return kernel


def _make_twostage_kernel(prim_relu6, compute_dtype):
    """Used only when the cheap branch has an intermediate ReLU6 (inp1 >= 16 and relu)."""
    def kernel(p_ref, x2_ref, wc_ref, b1_ref, wp1_ref, w2_ref, b2_ref, o_ref):
        # wc_ref : (C1, 9*C1)  cheap 3x3 conv weights with BN1 scale folded
        # wp1_ref: (OUP, C1)   1x1 conv rows for y1, BN2 scale folded
        y1 = jnp.dot(wc_ref[...], p_ref[0], preferred_element_type=jnp.float32)
        y1 = jnp.clip(y1 + b1_ref[...], 0.0, 6.0)                  # BN1 bias + ReLU6 (f32)
        y1 = y1.astype(compute_dtype)                              # back to MXU dtype
        acc = jnp.dot(wp1_ref[...], y1, preferred_element_type=jnp.float32)
        acc = acc + jnp.dot(w2_ref[...], x2_ref[0], preferred_element_type=jnp.float32)
        out = acc + b2_ref[...]
        if prim_relu6:
            out = jnp.clip(out, 0.0, 6.0)
        o_ref[0] = out.astype(o_ref.dtype)
    return kernel


# ----------------------------- wrapper -----------------------------

def _pick_pixel_block(hw, target=512):
    """Largest multiple of 128 dividing hw and <= target; fall back to the full image."""
    if hw % 128 != 0:
        return hw
    best = None
    m = 128
    while m <= hw:
        if hw % m == 0 and m <= target:
            best = m
        m += 128
    return best if best is not None else hw


def init_mf1_params(key, inp, oup, dw_size=3, kernel_size=1):
    """Deterministic synthetic parameters matching the PyTorch module's shapes."""
    inp1 = inp // 3
    ks = jax.random.split(key, 10)
    fan_c = inp1 * dw_size * dw_size
    fan_p = inp * kernel_size * kernel_size
    return {
        # cheap_operation: Conv2d(inp1, inp1, 3, 1, 1, bias=False) + BN(inp1)
        "wc": jax.random.normal(ks[0], (inp1, inp1, dw_size, dw_size), jnp.float32) / math.sqrt(fan_c),
        "g1": jax.random.uniform(ks[1], (inp1,), jnp.float32, 0.5, 1.5),
        "b1": 0.1 * jax.random.normal(ks[2], (inp1,), jnp.float32),
        "m1": 0.1 * jax.random.normal(ks[3], (inp1,), jnp.float32),
        "v1": jax.random.uniform(ks[4], (inp1,), jnp.float32, 0.5, 1.5),
        # primary_conv: Conv2d(inp, oup, 1, 1, 0, bias=False) + BN(oup)
        "wp": jax.random.normal(ks[5], (oup, inp, kernel_size, kernel_size), jnp.float32) / math.sqrt(fan_p),
        "g2": jax.random.uniform(ks[6], (oup,), jnp.float32, 0.5, 1.5),
        "b2": 0.1 * jax.random.normal(ks[7], (oup,), jnp.float32),
        "m2": 0.1 * jax.random.normal(ks[8], (oup,), jnp.float32),
        "v2": jax.random.uniform(ks[9], (oup,), jnp.float32, 0.5, 1.5),
    }


def mf1_pallas(x_nchw, params, inp, oup, relu=True, eps=1e-5,
               compute_dtype=jnp.bfloat16, block_pixels=None):
    """MF1 forward. x_nchw: (N, inp, H, W) float32 -> (N, oup, H, W)."""
    N, C, H, W = x_nchw.shape
    assert C == inp
    C1 = inp // 3
    C2 = inp - C1
    Kd = params["wc"].shape[-1]            # dw_size (3 by default)
    pad = Kd // 2
    KK = Kd * Kd * C1                      # im2col feature depth
    HW = H * W

    # ---- fold eval-mode BatchNorm into weights/biases (trace time, f32) ----
    s1 = params["g1"] / jnp.sqrt(params["v1"] + eps)
    b1 = params["b1"] - params["m1"] * s1
    s2 = params["g2"] / jnp.sqrt(params["v2"] + eps)
    b2 = params["b2"] - params["m2"] * s2

    wp = params["wp"][:, :, 0, 0]                              # (OUP, inp), 1x1 conv
    wp1_s = wp[:, :C1] * s2[:, None]                           # BN2 scale folded
    wp2_s = wp[:, C1:] * s2[:, None]
    # cheap conv weight flattened to (C1_out, (dy*Kd+dx)*C1 + c_in) to match im2col order
    wc_flat = jnp.transpose(params["wc"], (0, 2, 3, 1)).reshape(C1, KK)

    cheap_relu6 = (C1 >= 16) and relu
    prim_relu6 = (oup >= 16) and relu

    # ---- wrapper glue: split / pad / im2col in channel-major layout (no NHWC transpose) ----
    # im2col expands only the small x1 split (inp//3 channels); accepted per review option (a).
    x2 = x_nchw[:, C1:].reshape(N, C2, HW).astype(compute_dtype)
    x1p = jnp.pad(x_nchw[:, :C1], ((0, 0), (0, 0), (pad, pad), (pad, pad)))
    taps = [x1p[:, :, dy:dy + H, dx:dx + W] for dy in range(Kd) for dx in range(Kd)]
    patches = jnp.concatenate(taps, axis=1).reshape(N, KK, HW).astype(compute_dtype)

    # ---- grid: (batch, pixel-block), both parallel; pixel blocks lane-dense ----
    if block_pixels is None:
        block_pixels = _pick_pixel_block(HW)
    assert HW % block_pixels == 0
    n_pix_blocks = HW // block_pixels

    act_spec_p = pl.BlockSpec((1, KK, block_pixels), lambda n, p: (n, 0, p))
    act_spec_x2 = pl.BlockSpec((1, C2, block_pixels), lambda n, p: (n, 0, p))

    if not cheap_relu6:
        # Algebraic fusion of the cheap branch into the primary 1x1 conv.
        w1f = ((wp1_s * s1[None, :]) @ wc_flat).astype(compute_dtype)     # (OUP, KK)
        bias = (wp1_s @ b1 + b2).reshape(oup, 1).astype(jnp.float32)
        kernel = _make_fused_kernel(prim_relu6)
        inputs = (patches, x2, w1f, wp2_s.astype(compute_dtype), bias)
        in_specs = [
            act_spec_p,
            act_spec_x2,
            pl.BlockSpec((oup, KK), lambda n, p: (0, 0)),
            pl.BlockSpec((oup, C2), lambda n, p: (0, 0)),
            pl.BlockSpec((oup, 1), lambda n, p: (0, 0)),
        ]
    else:
        # Intermediate ReLU6 present -> two-stage (still one matmul for the 3x3 conv).
        wc_s = (wc_flat * s1[:, None]).astype(compute_dtype)              # (C1, KK)
        kernel = _make_twostage_kernel(prim_relu6, compute_dtype)
        inputs = (patches, x2, wc_s,
                  b1.reshape(C1, 1).astype(jnp.float32),
                  wp1_s.astype(compute_dtype), wp2_s.astype(compute_dtype),
                  b2.reshape(oup, 1).astype(jnp.float32))
        in_specs = [
            act_spec_p,
            act_spec_x2,
            pl.BlockSpec((C1, KK), lambda n, p: (0, 0)),
            pl.BlockSpec((C1, 1), lambda n, p: (0, 0)),
            pl.BlockSpec((oup, C1), lambda n, p: (0, 0)),
            pl.BlockSpec((oup, C2), lambda n, p: (0, 0)),
            pl.BlockSpec((oup, 1), lambda n, p: (0, 0)),
        ]

    out_flat = pl.pallas_call(
        kernel,
        out_shape=jax.ShapeDtypeStruct((N, oup, HW), x_nchw.dtype),
        grid_spec=pltpu.PrefetchScalarGridSpec(
            num_scalar_prefetch=0,
            grid=(N, n_pix_blocks),
            in_specs=in_specs,
            out_specs=pl.BlockSpec((1, oup, block_pixels), lambda n, p: (n, 0, p)),
        ),
        compiler_params=pltpu.CompilerParams(
            dimension_semantics=("parallel", "parallel"),
            vmem_limit_bytes=32 * 1024 * 1024,   # explicit budget (v7x VMEM is 64 MiB total)
        ),
    )(*inputs)

    return out_flat.reshape(N, oup, H, W)          # already NCHW, no transpose needed


# ---------------- pure-JAX reference (for validation) ----------------
def _bn_nchw(x, g, b, m, v, eps):
    inv = g / jnp.sqrt(v + eps)
    return x * inv[None, :, None, None] + (b - m * inv)[None, :, None, None]


def mf1_reference(x, params, inp, oup, relu=True, eps=1e-5):
    inp1 = inp // 3
    x1, x2 = x[:, :inp1], x[:, inp1:]
    y1 = jax.lax.conv_general_dilated(
        x1, params["wc"], window_strides=(1, 1), padding=((1, 1), (1, 1)),
        dimension_numbers=("NCHW", "OIHW", "NCHW"),
        precision=jax.lax.Precision.HIGHEST)
    y1 = _bn_nchw(y1, params["g1"], params["b1"], params["m1"], params["v1"], eps)
    if inp1 >= 16 and relu:
        y1 = jnp.clip(y1, 0.0, 6.0)
    z = jnp.concatenate([y1, x2], axis=1)
    out = jax.lax.conv_general_dilated(
        z, params["wp"], window_strides=(1, 1), padding=((0, 0), (0, 0)),
        dimension_numbers=("NCHW", "OIHW", "NCHW"),
        precision=jax.lax.Precision.HIGHEST)
    out = _bn_nchw(out, params["g2"], params["b2"], params["m2"], params["v2"], eps)
    if oup >= 16 and relu:
        out = jnp.clip(out, 0.0, 6.0)
    return out


if __name__ == "__main__":
    key = jax.random.PRNGKey(0)
    k_xa, k_pa, k_xb, k_pb = jax.random.split(key, 4)

    # Config A: inp1 = 4 < 16 -> fused path (no intermediate ReLU6); oup = 16 -> ReLU6.
    N, inp, oup, H, W = 2, 12, 16, 16, 16
    x = jax.random.normal(k_xa, (N, inp, H, W), jnp.float32)
    params = init_mf1_params(k_pa, inp, oup)
    ref = mf1_reference(x, params, inp, oup)

    # f32 compute path (tight check)
    out_f32 = jax.block_until_ready(
        mf1_pallas(x, params, inp, oup, compute_dtype=jnp.float32, block_pixels=128))
    assert out_f32.shape == (N, oup, H, W), out_f32.shape
    np.testing.assert_allclose(np.asarray(out_f32), np.asarray(ref), rtol=2e-2, atol=2e-2)

    # bf16 MXU path (f32 accumulation / elementwise; looser tolerance)
    out_bf16 = jax.block_until_ready(
        mf1_pallas(x, params, inp, oup, compute_dtype=jnp.bfloat16, block_pixels=128))
    np.testing.assert_allclose(np.asarray(out_bf16), np.asarray(ref), rtol=5e-2, atol=5e-2)

    # Config B: inp1 = 16 >= 16 -> two-stage path with intermediate ReLU6.
    N2, inp_b, oup_b, H2, W2 = 1, 48, 32, 16, 16
    x_b = jax.random.normal(k_xb, (N2, inp_b, H2, W2), jnp.float32)
    params_b = init_mf1_params(k_pb, inp_b, oup_b)
    ref_b = mf1_reference(x_b, params_b, inp_b, oup_b)
    out_b = jax.block_until_ready(
        mf1_pallas(x_b, params_b, inp_b, oup_b, compute_dtype=jnp.bfloat16))
    assert out_b.shape == (N2, oup_b, H2, W2), out_b.shape
    np.testing.assert_allclose(np.asarray(out_b), np.asarray(ref_b), rtol=5e-2, atol=5e-2)

    print("KERNEL_OK")
</pallas_src>

<mosaic_0001>
module attributes {stable_mosaic.version = 11 : i64} {
  func.func @kernel(%arg0: i32, %arg1: i32, %arg2: memref<1x36x128xf32, #tpu.memory_space<vmem>>, %arg3: memref<1x8x128xf32, #tpu.memory_space<vmem>>, %arg4: memref<16x36xf32, #tpu.memory_space<vmem>>, %arg5: memref<16x8xf32, #tpu.memory_space<vmem>>, %arg6: memref<16x1xf32, #tpu.memory_space<vmem>>, %arg7: memref<1x16x128xf32, #tpu.memory_space<vmem>>) attributes {dimension_semantics = [#tpu.dimension_semantics<parallel>, #tpu.dimension_semantics<parallel>], iteration_bounds = array<i64: 2, 2>, scalar_prefetch = 0 : i64, scratch_operands = 0 : i64, tpu.core_type = #tpu.core_type<tc>, window_params = [{transform_indices = @transform_0, window_bounds = array<i64: 1, 36, 128>}, {transform_indices = @transform_1, window_bounds = array<i64: 1, 8, 128>}, {pipeline_mode = #tpu.pipeline_mode<synchronous>, transform_indices = @transform_2, window_bounds = array<i64: 16, 36>}, {pipeline_mode = #tpu.pipeline_mode<synchronous>, transform_indices = @transform_3, window_bounds = array<i64: 16, 8>}, {pipeline_mode = #tpu.pipeline_mode<synchronous>, transform_indices = @transform_4, window_bounds = array<i64: 16, 1>}, {transform_indices = @transform_5, window_bounds = array<i64: 1, 16, 128>}]} {
    %c0 = arith.constant 0 : index
    %c0_0 = arith.constant 0 : index
    %0 = vector.load %arg4[%c0, %c0_0] : memref<16x36xf32, #tpu.memory_space<vmem>>, vector<16x36xf32>
    %c0_1 = arith.constant 0 : index
    %c0_2 = arith.constant 0 : index
    %c0_3 = arith.constant 0 : index
    %1 = vector.load %arg2[%c0_1, %c0_2, %c0_3] : memref<1x36x128xf32, #tpu.memory_space<vmem>>, vector<1x36x128xf32>
    %2 = vector.shape_cast %1 : vector<1x36x128xf32> to vector<36x128xf32>
    %cst = arith.constant dense<0.000000e+00> : vector<16x128xf32>
    %3 = tpu.matmul %0, %2, %cst {dimension_numbers = #tpu.dot_dimension_numbers<[1], [0], [0], [1], [0, 0, 1, 1], [], []>} : vector<16x36xf32>, vector<36x128xf32>, vector<16x128xf32> -> vector<16x128xf32>
    %c0_4 = arith.constant 0 : index
    %c0_5 = arith.constant 0 : index
    %4 = vector.load %arg5[%c0_4, %c0_5] : memref<16x8xf32, #tpu.memory_space<vmem>>, vector<16x8xf32>
    %c0_6 = arith.constant 0 : index
    %c0_7 = arith.constant 0 : index
    %c0_8 = arith.constant 0 : index
    %5 = vector.load %arg3[%c0_6, %c0_7, %c0_8] : memref<1x8x128xf32, #tpu.memory_space<vmem>>, vector<1x8x128xf32>
    %6 = vector.shape_cast %5 : vector<1x8x128xf32> to vector<8x128xf32>
    %cst_9 = arith.constant dense<0.000000e+00> : vector<16x128xf32>
    %7 = tpu.matmul %4, %6, %cst_9 {dimension_numbers = #tpu.dot_dimension_numbers<[1], [0], [0], [1], [0, 0, 1, 1], [], []>} : vector<16x8xf32>, vector<8x128xf32>, vector<16x128xf32> -> vector<16x128xf32>
    %8 = arith.addf %3, %7 : vector<16x128xf32>
    %c0_10 = arith.constant 0 : index
    %c0_11 = arith.constant 0 : index
    %9 = vector.load %arg6[%c0_10, %c0_11] : memref<16x1xf32, #tpu.memory_space<vmem>>, vector<16x1xf32>
    %10 = vector.broadcast %9 : vector<16x1xf32> to vector<16x128xf32>
    %11 = arith.addf %8, %10 : vector<16x128xf32>
    %cst_12 = arith.constant 0.000000e+00 : f32
    %cst_13 = arith.constant 6.000000e+00 : f32
    %12 = vector.broadcast %cst_12 : f32 to vector<16x128xf32>
    %13 = arith.maximumf %12, %11 : vector<16x128xf32>
    %14 = vector.broadcast %cst_13 : f32 to vector<16x128xf32>
    %15 = arith.minimumf %14, %13 : vector<16x128xf32>
    %c0_14 = arith.constant 0 : index
    %c0_15 = arith.constant 0 : index
    %c0_16 = arith.constant 0 : index
    %16 = vector.load %arg7[%c0_14, %c0_15, %c0_16] : memref<1x16x128xf32, #tpu.memory_space<vmem>>, vector<1x16x128xf32>
    %17 = vector.shape_cast %16 : vector<1x16x128xf32> to vector<16x128xf32>
    %18 = vector.shape_cast %15 : vector<16x128xf32> to vector<1x16x128xf32>
    tpu.vector_store %arg7[%c0_14, %c0_15, %c0_16], %18 {strides = array<i32>} : memref<1x16x128xf32, #tpu.memory_space<vmem>>, vector<1x16x128xf32>,
    return
  }
  func.func @transform_0(%arg0: i32, %arg1: i32) -> (i32, i32, i32) {
    %c0_i32 = arith.constant 0 : i32
    %c0_i32_0 = arith.constant 0 : i32
    return %arg0, %c0_i32, %arg1 : i32, i32, i32
  }
  func.func @transform_1(%arg0: i32, %arg1: i32) -> (i32, i32, i32) {
    %c0_i32 = arith.constant 0 : i32
    %c0_i32_0 = arith.constant 0 : i32
    return %arg0, %c0_i32, %arg1 : i32, i32, i32
  }
  func.func @transform_2(%arg0: i32, %arg1: i32) -> (i32, i32) {
    %c0_i32 = arith.constant 0 : i32
    %c0_i32_0 = arith.constant 0 : i32
    %c0_i32_1 = arith.constant 0 : i32
    return %c0_i32, %c0_i32_0 : i32, i32
  }
  func.func @transform_3(%arg0: i32, %arg1: i32) -> (i32, i32) {
    %c0_i32 = arith.constant 0 : i32
    %c0_i32_0 = arith.constant 0 : i32
    %c0_i32_1 = arith.constant 0 : i32
    return %c0_i32, %c0_i32_0 : i32, i32
  }
  func.func @transform_4(%arg0: i32, %arg1: i32) -> (i32, i32) {
    %c0_i32 = arith.constant 0 : i32
    %c0_i32_0 = arith.constant 0 : i32
    %c0_i32_1 = arith.constant 0 : i32
    return %c0_i32, %c0_i32_0 : i32, i32
  }
  func.func @transform_5(%arg0: i32, %arg1: i32) -> (i32, i32, i32) {
    %c0_i32 = arith.constant 0 : i32
    %c0_i32_0 = arith.constant 0 : i32
    return %arg0, %c0_i32, %arg1 : i32, i32, i32
  }
}

</mosaic_0001>

<llo_original>
// kernel: tpu_custom_call.1
$region0: #{tpu_custom_call.1}
  #allocation0 [shape = 'u32[]', space=smem, size = 0x4, offset = 0x4, fixed_abs, tag = 'smem constant byte address 0x4 - core index']
  #allocation1 [shape = 'u32[144,128]{1,0:T(1,128)}', space=vmem, size = 0x12000, scoped, tag = 'internal scratch']
  %s0 = inlined_call_operand.vmem [shape: f32[2,36,256], index: 0, kind: input, shape index: {}]
  %s1 = inlined_call_operand.vmem [shape: f32[2,8,256], index: 1, kind: input, shape index: {}]
  %s2 = inlined_call_operand.vmem [shape: f32[16,36], index: 2, kind: input, shape index: {}]
  %s3 = inlined_call_operand.vmem [shape: f32[16,8], index: 3, kind: input, shape index: {}]
  %s4 = inlined_call_operand.vmem [shape: f32[16,1], index: 4, kind: input, shape index: {}]
  %s5 = inlined_call_operand.hbm [shape: f32[2,16,256], index: 5, kind: output, shape index: {}]
  %s6 = sld [smem:[#allocation0]]
  $region91: #{tpu_custom_call.1} parent=0
    _
  %s8 = ssub.s32 1, %s6
  %s9 = scalar_select 0, %s8, %s6
  $region1: #{tpu_custom_call.1} parent=0
    #allocation2 [shape = 'u8[40960]{0}', space=vmem, size = 0xa000, scoped, tag = 'input window, operand 0']
    #allocation3 [shape = 'u8[16384]{0}', space=vmem, size = 0x4000, scoped, tag = 'output window, operand 0']
    #allocation4 [shape = 's32[2]{0}', space=sflag, size = 0x8, scoped, tag = 'scoped memory for tpu_custom_call.1']
    %10 = vsyncpa [#allocation4], 0
    %s11 = scalar_lea.sflag [#allocation4], 1
    %12 = vsyncpa %s11, 0
    loop: start=0, step=1, limit=6
    $region2: #{tpu_custom_call.1} parent=1 // loop_pre_header
      _
    $region3: #{tpu_custom_call.1} parent=1 // loop_header
      %s14 = sphi 0, %s18
      %p15 = scmp.ge.s32.totalorder %s14, 6
      %s21 = sphi 0, %s33
      %s22 = sphi 0, %s29
      %s23 = sphi 0, %s21
      %s24 = sphi 0, %s22
      %s25 = sphi 0, %s23
      %s26 = sphi 0, %s24
      %s38 = sphi 0, %s40
      %s41 = sphi 0, %s38
      %s42 = sphi 0, %s41
      %s58 = sphi 0, %s42
      %s66 = sphi 0, %s68
      %s69 = sphi 0, %s66
      %s70 = sphi 0, %s69
      %s86 = sphi 0, %s70
      %s90 = sphi 0, %s90
      %s92 = sphi 0, %s90
      %s93 = sphi 0, %s92
      %s107 = sphi 0, %s93
      %s111 = sphi 0, %s111
      %s113 = sphi 0, %s111
      %s114 = sphi 0, %s113
      %s128 = sphi 0, %s114
      %s132 = sphi 0, %s132
      %s134 = sphi 0, %s132
      %s135 = sphi 0, %s134
      %s149 = sphi 0, %s135
      %s157 = sphi 0, %s159
      %s160 = sphi 0, %s157
      %s161 = sphi 0, %s160
      %s177 = sphi 0, %s161
    $region4: #{tpu_custom_call.1} parent=1 // loop_header_branch
      %17 = sbr.rel (%p15) target = $region8
    $region5: #{tpu_custom_call.1} parent=1 // loop_body
      %s19 = ssub.s32 %s14, 1
      %s20 = ssub.s32 %s14, 2
      %s27 = sadd.s32 1, %s22
      %p28 = scmp.ge.s32.totalorder %s27, 2
      %s29 = scalar_select %p28, 0, %s27
      %s30 = sadd.s32 1, %s21
      %s31 = scalar_select %p28, %s30, %s21
      %p32 = scmp.ge.s32.totalorder %s31, 2
      %s33 = scalar_select %p32, 0, %s31
      %s34 = ssub.s32 %s21, %s33
      %s35 = ssub.s32 %s22, %s29
      %s36 = sor.u32 %s34, %s35
      %p37 = scmp.eq.s32.totalorder %s36, 0
      %s39 = sadd.s32 %s38, 1
      %s40 = scalar_select %p37, %s38, %s39
      %p43 = pneg %p37
      %p44 = scmp.eq.s32.totalorder %s14, 3
      %p45 = por %p43, %p44
      %p46 = scmp.ne.s32.totalorder %s38, %s41
      %p47 = scmp.eq.s32.totalorder %s14, 0
      %p48 = por %p46, %p47
      %p49 = scmp.ne.s32.totalorder %s38, %s41
      %p50 = scmp.eq.s32.totalorder %s19, 3
      %p51 = por %p49, %p50
      %p52 = scmp.ne.s32.totalorder %s41, %s42
      %p53 = scmp.eq.s32.totalorder %s19, 0
      %p54 = por %p52, %p53
      %p55 = scmp.ne.s32.totalorder %s41, %s42
      %p56 = scmp.eq.s32.totalorder %s20, 3
      %p57 = por %p55, %p56
      %p59 = scmp.ne.s32.totalorder %s42, %s58
      %p60 = scmp.eq.s32.totalorder %s20, 0
      %p61 = por %p59, %p60
      %s62 = ssub.s32 %s21, %s33
      %s63 = ssub.s32 %s22, %s29
      %s64 = sor.u32 %s62, %s63
      %p65 = scmp.eq.s32.totalorder %s64, 0
      %s67 = sadd.s32 %s66, 1
      %s68 = scalar_select %p65, %s66, %s67
      %p71 = pneg %p65
      %p72 = scmp.eq.s32.totalorder %s14, 3
      %p73 = por %p71, %p72
      %p74 = scmp.ne.s32.totalorder %s66, %s69
      %p75 = scmp.eq.s32.totalorder %s14, 0
      %p76 = por %p74, %p75
      %p77 = scmp.ne.s32.totalorder %s66, %s69
      %p78 = scmp.eq.s32.totalorder %s19, 3
      %p79 = por %p77, %p78
      %p80 = scmp.ne.s32.totalorder %s69, %s70
      %p81 = scmp.eq.s32.totalorder %s19, 0
      %p82 = por %p80, %p81
      %p83 = scmp.ne.s32.totalorder %s69, %s70
      %p84 = scmp.eq.s32.totalorder %s20, 3
      %p85 = por %p83, %p84
      %p87 = scmp.ne.s32.totalorder %s70, %s86
      %p88 = scmp.eq.s32.totalorder %s20, 0
      %p89 = por %p87, %p88
      %s91 = sadd.s32 %s90, 1
      %p94 = scmp.eq.s32.totalorder %s14, 3
      %p95 = scmp.ne.s32.totalorder %s90, %s92
      %p96 = scmp.eq.s32.totalorder %s14, 0
      %p97 = por %p95, %p96
      %p98 = scmp.ne.s32.totalorder %s90, %s92
      %p99 = scmp.eq.s32.totalorder %s19, 3
      %p100 = por %p98, %p99
      %p101 = scmp.ne.s32.totalorder %s92, %s93
      %p102 = scmp.eq.s32.totalorder %s19, 0
      %p103 = por %p101, %p102
      %p104 = scmp.ne.s32.totalorder %s92, %s93
      %p105 = scmp.eq.s32.totalorder %s20, 3
      %p106 = por %p104, %p105
      %p108 = scmp.ne.s32.totalorder %s93, %s107
      %p109 = scmp.eq.s32.totalorder %s20, 0
      %p110 = por %p108, %p109
      %s112 = sadd.s32 %s111, 1
      %p115 = scmp.eq.s32.totalorder %s14, 3
      %p116 = scmp.ne.s32.totalorder %s111, %s113
      %p117 = scmp.eq.s32.totalorder %s14, 0
      %p118 = por %p116, %p117
      %p119 = scmp.ne.s32.totalorder %s111, %s113
      %p120 = scmp.eq.s32.totalorder %s19, 3
      %p121 = por %p119, %p120
      %p122 = scmp.ne.s32.totalorder %s113, %s114
      %p123 = scmp.eq.s32.totalorder %s19, 0
      %p124 = por %p122, %p123
      %p125 = scmp.ne.s32.totalorder %s113, %s114
      %p126 = scmp.eq.s32.totalorder %s20, 3
      %p127 = por %p125, %p126
      %p129 = scmp.ne.s32.totalorder %s114, %s128
      %p130 = scmp.eq.s32.totalorder %s20, 0
      %p131 = por %p129, %p130
      %s133 = sadd.s32 %s132, 1
      %p136 = scmp.eq.s32.totalorder %s14, 3
      %p137 = scmp.ne.s32.totalorder %s132, %s134
      %p138 = scmp.eq.s32.totalorder %s14, 0
      %p139 = por %p137, %p138
      %p140 = scmp.ne.s32.totalorder %s132, %s134
      %p141 = scmp.eq.s32.totalorder %s19, 3
      %p142 = por %p140, %p141
      %p143 = scmp.ne.s32.totalorder %s134, %s135
      %p144 = scmp.eq.s32.totalorder %s19, 0
      %p145 = por %p143, %p144
      %p146 = scmp.ne.s32.totalorder %s134, %s135
      %p147 = scmp.eq.s32.totalorder %s20, 3
      %p148 = por %p146, %p147
      %p150 = scmp.ne.s32.totalorder %s135, %s149
      %p151 = scmp.eq.s32.totalorder %s20, 0
      %p152 = por %p150, %p151
      %s153 = ssub.s32 %s21, %s33
      %s154 = ssub.s32 %s22, %s29
      %s155 = sor.u32 %s153, %s154
      %p156 = scmp.eq.s32.totalorder %s155, 0
      %s158 = sadd.s32 %s157, 1
      %s159 = scalar_select %p156, %s157, %s158
      %p162 = pneg %p156
      %p163 = scmp.eq.s32.totalorder %s14, 3
      %p164 = por %p162, %p163
      %p165 = scmp.ne.s32.totalorder %s157, %s160
      %p166 = scmp.eq.s32.totalorder %s14, 0
      %p167 = por %p165, %p166
      %p168 = scmp.ne.s32.totalorder %s157, %s160
      %p169 = scmp.eq.s32.totalorder %s19, 3
      %p170 = por %p168, %p169
      %p171 = scmp.ne.s32.totalorder %s160, %s161
      %p172 = scmp.eq.s32.totalorder %s19, 0
      %p173 = por %p171, %p172
      %p174 = scmp.ne.s32.totalorder %s160, %s161
      %p175 = scmp.eq.s32.totalorder %s20, 3
      %p176 = por %p174, %p175
      %p178 = scmp.ne.s32.totalorder %s161, %s177
      %p179 = scmp.eq.s32.totalorder %s20, 0
      %p180 = por %p178, %p179
      %p181 = scmp.le.s32.totalorder 1, %s14
      %p182 = scmp.lt.s32.totalorder %s14, 5
      %p183 = pnand %p181, %p182
      %p184 = pneg %p183
      // Predicated region
      $region9: #{tpu_custom_call.1} parent=5 // pred_check
        _
      $region10: #{tpu_custom_call.1} parent=5 // pred_check_branch
        %186 = sbr.rel (%p183) target = $region12
      $region11: #{tpu_custom_call.1} parent=5 // pred_region
        %s187 = ssub.s32 %s14, 1
        // Predicated region
        $region13: #{tpu_custom_call.1} parent=11 // pred_check
          %p188 = pneg %p103
        $region14: #{tpu_custom_call.1} parent=11 // pred_check_branch
          %190 = sbr.rel (%p188) target = $region16
        $region15: #{tpu_custom_call.1} parent=11 // pred_region
          _
        $region16: #{tpu_custom_call.1} parent=11 // pred_fallthru
          _
        // Predicated region
        $region17: #{tpu_custom_call.1} parent=11 // pred_check
          %p191 = pneg %p124
        $region18: #{tpu_custom_call.1} parent=11 // pred_check_branch
          %193 = sbr.rel (%p191) target = $region20
        $region19: #{tpu_custom_call.1} parent=11 // pred_region
          _
        $region20: #{tpu_custom_call.1} parent=11 // pred_fallthru
          _
        // Predicated region
        $region21: #{tpu_custom_call.1} parent=11 // pred_check
          %p194 = pneg %p145
        $region22: #{tpu_custom_call.1} parent=11 // pred_check_branch
          %196 = sbr.rel (%p194) target = $region24
        $region23: #{tpu_custom_call.1} parent=11 // pred_region
          _
        $region24: #{tpu_custom_call.1} parent=11 // pred_fallthru
          _
      $region12: #{tpu_custom_call.1} parent=5 // pred_fallthru
        _
      %p197 = scmp.lt.s32.totalorder %s14, 4
      // Predicated region
      $region25: #{tpu_custom_call.1} parent=5 // pred_check
        %p198 = pneg %p197
      $region26: #{tpu_custom_call.1} parent=5 // pred_check_branch
        %200 = sbr.rel (%p198) target = $region28
      $region27: #{tpu_custom_call.1} parent=5 // pred_region
        // Predicated region
        $region29: #{tpu_custom_call.1} parent=27 // pred_check
          %p201 = pneg %p48
        $region30: #{tpu_custom_call.1} parent=27 // pred_check_branch
          %203 = sbr.rel (%p201) target = $region32
        $region31: #{tpu_custom_call.1} parent=27 // pred_region
          %s204 = sand.u32 %s38, 1
          %s205 = sand.u32 %s38, 1
          %s206 = smul.addr %s205, 40
          %s207 = scalar_lea.vmem [#allocation2], %s206
          %s208 = smul.addr %s21, 10
          %s209 = sadd.s32 %s22, %s208
          %s210 = smul.addr %s209, 8
          %s211 = scalar_lea.vmem %s0, %s210
          // Predicated region
          $region33: #{tpu_custom_call.1} parent=31 // pred_check
            _
          $region34: #{tpu_custom_call.1} parent=31 // pred_check_branch
            %213 = sbr.rel (0) target = $region36
          $region35: #{tpu_custom_call.1} parent=31 // pred_region
            // Predicated region
            $region37: #{tpu_custom_call.1} parent=35 // pred_check
              _
            $region38: #{tpu_custom_call.1} parent=35 // pred_check_branch
              %215 = sbr.rel (0) target = $region40
            $region39: #{tpu_custom_call.1} parent=35 // pred_region
              // Predicated region
              $region52: #{tpu_custom_call.1} parent=39 // pred_check
                _
              $region53: #{tpu_custom_call.1} parent=39 // pred_check_branch
                %239 = sbr.rel (0) target = $region55
              $region54: #{tpu_custom_call.1} parent=39 // pred_region
                loop: start=0, step=1, limit=1
                $region56: #{tpu_custom_call.1} parent=54 // loop_pre_header
                  _
                $region57: #{tpu_custom_call.1} parent=54 // loop_header
                  %s241 = sphi 0, %s245
                  %p242 = scmp.ge.s32.totalorder %s241, 1
                  %s246 = sphi %s211, %s211
                  %s247 = sphi %s207, %s207
                $region58: #{tpu_custom_call.1} parent=54 // loop_header_branch
                  %244 = sbr.rel (%p242) target = $region62
                $region59: #{tpu_custom_call.1} parent=54 // loop_body
                  %v248 = vld [vmem:[%s246] sm:$0xff]
                  %249 = vst [vmem:[%s247] sm:$0xff] %v248
                  %v250 = vld [vmem:[%s246 + $0x10] sm:$0xff]
                  %251 = vst [vmem:[%s247 + $0x8] sm:$0xff] %v250
                  %v252 = vld [vmem:[%s246 + $0x20] sm:$0xff]
                  %253 = vst [vmem:[%s247 + $0x10] sm:$0xff] %v252
                  %v254 = vld [vmem:[%s246 + $0x30] sm:$0xff]
                  %255 = vst [vmem:[%s247 + $0x18] sm:$0xff] %v254
                  %v256 = vld [vmem:[%s246 + $0x40] sm:$0xff]
                  %257 = vst [vmem:[%s247 + $0x20] sm:$0xff] %v256
                $region60: #{tpu_custom_call.1} parent=54 // loop_footer
                  %s245 = sadd.s32 1, %s241
                $region61: #{tpu_custom_call.1} parent=54 // loop_footer_branch
                  %240 = sbr.rel target = $region57
                $region62: #{tpu_custom_call.1} parent=54 // loop_exit
                  _
              $region55: #{tpu_custom_call.1} parent=39 // pred_fallthru
                _
              // Predicated region
              $region63: #{tpu_custom_call.1} parent=39 // pred_check
                _
              $region64: #{tpu_custom_call.1} parent=39 // pred_check_branch
                %259 = sbr.rel target = $region66
              $region65: #{tpu_custom_call.1} parent=39 // pred_region
                _
              $region66: #{tpu_custom_call.1} parent=39 // pred_fallthru
                _
            $region40: #{tpu_custom_call.1} parent=35 // pred_fallthru
              _
            // Predicated region
            $region41: #{tpu_custom_call.1} parent=35 // pred_check
              _
            $region42: #{tpu_custom_call.1} parent=35 // pred_check_branch
              %217 = sbr.rel target = $region44
            $region43: #{tpu_custom_call.1} parent=35 // pred_region
              %s219 = ssub.s32 256, 1
              loop: start=0, step=1, limit=1
              $region45: #{tpu_custom_call.1} parent=43 // loop_pre_header
                _
              $region46: #{tpu_custom_call.1} parent=43 // loop_header
                %s221 = sphi 0, %s225
                %p222 = scmp.ge.s32.totalorder %s221, 1
                %s226 = sphi %s211, %s211
                %s227 = sphi %s207, %s207
              $region47: #{tpu_custom_call.1} parent=43 // loop_header_branch
                %224 = sbr.rel (%p222) target = $region51
              $region48: #{tpu_custom_call.1} parent=43 // loop_body
                %v228 = vld [vmem:[%s226] sm:%s219]
                %229 = vst [vmem:[%s227] sm:%s219] %v228
                %v230 = vld [vmem:[%s226 + $0x10] sm:%s219]
                %231 = vst [vmem:[%s227 + $0x8] sm:%s219] %v230
                %v232 = vld [vmem:[%s226 + $0x20] sm:%s219]
                %233 = vst [vmem:[%s227 + $0x10] sm:%s219] %v232
                %v234 = vld [vmem:[%s226 + $0x30] sm:%s219]
                %235 = vst [vmem:[%s227 + $0x18] sm:%s219] %v234
                %v236 = vld [vmem:[%s226 + $0x40] sm:%s219]
                %237 = vst [vmem:[%s227 + $0x20] sm:%s219] %v236
              $region49: #{tpu_custom_call.1} parent=43 // loop_footer
                %s225 = sadd.s32 1, %s221
              $region50: #{tpu_custom_call.1} parent=43 // loop_footer_branch
                %220 = sbr.rel target = $region46
              $region51: #{tpu_custom_call.1} parent=43 // loop_exit
                _
            $region44: #{tpu_custom_call.1} parent=35 // pred_fallthru
              _
          $region36: #{tpu_custom_call.1} parent=31 // pred_fallthru
            _
          %260 = vnop
        $region32: #{tpu_custom_call.1} parent=27 // pred_fallthru
          _
        // Predicated region
        $region67: #{tpu_custom_call.1} parent=27 // pred_check
          %p261 = pneg %p76
        $region68: #{tpu_custom_call.1} parent=27 // pred_check_branch
          %263 = sbr.rel (%p261) target = $region70
        $region69: #{tpu_custom_call.1} parent=27 // pred_region
          %p264 = scmp.lt.s32.totalorder %s21, 1
          %s265 = scalar_select %p264, %s21, 1
          %p266 = scmp.lt.s32.totalorder %s22, 1
          %s267 = scalar_select %p266, %s22, 1
          %s268 = smul.addr %s265, 2
          %s269 = sadd.s32 %s267, %s268
          %s270 = smul.addr %s269, 8
          %s271 = scalar_lea.vmem %s1, %s270
        $region70: #{tpu_custom_call.1} parent=27 // pred_fallthru
          _
      $region28: #{tpu_custom_call.1} parent=5 // pred_fallthru
        _
      %p272 = scmp.le.s32.totalorder 1, %s14
      %p273 = scmp.lt.s32.totalorder %s14, 5
      %p274 = pnand %p272, %p273
      %p275 = pneg %p274
      // Predicated region
      $region71: #{tpu_custom_call.1} parent=5 // pred_check
        _
      $region72: #{tpu_custom_call.1} parent=5 // pred_check_branch
        %277 = sbr.rel (%p274) target = $region74
      $region73: #{tpu_custom_call.1} parent=5 // pred_region
        %s278 = ssub.s32 %s14, 1
        %s279 = sand.u32 %s41, 1
        %s280 = sand.u32 %s41, 1
        %s281 = smul.addr %s280, 40
        %s282 = scalar_lea.vmem [#allocation2], %s281
        // Predicated region
        $region75: #{tpu_custom_call.1} parent=73 // pred_check
          %p283 = pneg %p54
        $region76: #{tpu_custom_call.1} parent=73 // pred_check_branch
          %285 = sbr.rel (%p283) target = $region78
        $region77: #{tpu_custom_call.1} parent=73 // pred_region
          _
        $region78: #{tpu_custom_call.1} parent=73 // pred_fallthru
          _
        %s286 = sand.u32 %s41, 1
        %s287 = sand.u32 %s41, 1
        %s288 = smul.addr %s287, 40
        %s289 = scalar_lea.vmem [#allocation2], %s288
        %p290 = pneg %p54
        %p291 = pneg %p51
        %p292 = scmp.lt.s32.totalorder %s23, 1
        %s293 = scalar_select %p292, %s23, 1
        %p294 = scmp.lt.s32.totalorder %s24, 1
        %s295 = scalar_select %p294, %s24, 1
        %s296 = smul.addr %s293, 2
        %s297 = sadd.s32 %s295, %s296
        %s298 = smul.addr %s297, 8
        %s299 = scalar_lea.vmem %s1, %s298
        %p300 = pneg %p82
        %p301 = pneg %p79
        %p302 = pneg %p103
        %p303 = pneg %p100
        %p304 = pneg %p124
        %p305 = pneg %p121
        %p306 = pneg %p145
        %p307 = pneg %p142
        %p308 = pneg %p173
        %p309 = pneg %p170
        %s310 = sand.u32 %s160, 1
        %s311 = scalar_lea.sflag [#allocation4], %s310
        %s312 = sand.u32 %s160, 1
        %s313 = smul.addr %s312, 16
        %s314 = scalar_lea.vmem [#allocation3], %s313
        %p315 = scmp.lt.s32.totalorder %s23, 1
        %s316 = scalar_select %p315, %s23, 1
        %p317 = scmp.lt.s32.totalorder %s24, 1
        %s318 = scalar_select %p317, %s24, 1
        %s319 = smul.addr %s316, 2
        %s320 = sadd.s32 %s318, %s319
        %s321 = smul.addr %s320, 8
        %s322 = scalar_lea.vmem %s1, %s321
        %v323 = vld [vmem:[%s2] sm:$0xff]
        %v324 = vld [vmem:[%s2 + $0x8] sm:$0xff]
        %v325 = vld [vmem:[%s282] sm:$0xff]
        %v326 = vld [vmem:[%s282 + $0x8] sm:$0xff]
        %v327 = vld [vmem:[%s282 + $0x10] sm:$0xff]
        %v328 = vld [vmem:[%s282 + $0x18] sm:$0xff]
        %v329 = vld [vmem:[%s282 + $0x20] sm:$0xf]
        %v330 = vld [vmem:[%s3] sm:$0xff]
        %v331 = vld [vmem:[%s3 + $0x8] sm:$0xff]
        %v332 = vld [vmem:[%s322] sm:$0xff]
        %vm333 = vcmask 64512
        %v335 = vsel %vm333, %v330, 0
        %v338 = vsel %vm333, %v331, 0
        %340 = vmatprep.subr.mxu0 0.0
        %341 = vmatpush1.msra.mxu0 0.0
        %342 = vmatprep.subr.mxu0 0.0
        %343 = vmatpush1.msra.mxu0 0.0
        %344 = vmatprep.subr.mxu0 0.0
        %345 = vmatpush1.msra.mxu0 0.0
        %346 = vmatprep.subr.mxu0 0.0
        %347 = vmatpush1.msra.mxu0 0.0
        %348 = vmatprep.subr.mxu0 0.0
        %349 = vmatpush1.msra.mxu0 0.0
        %350 = vmatprep.subr.mxu0 0.0
        %351 = vmatpush1.msra.mxu0 0.0
        %352 = vmatprep.subr.mxu0 0.0
        %353 = vmatpush1.msra.mxu0 0.0
        %354 = vmatprep.subr.mxu0 0.0
        %355 = vmatpush1.msra.mxu0 0.0
        %356 = vmatprep.subr.mxu0 0.0
        %357 = vmatpush1.msra.mxu0 0.0
        %358 = vmatprep.subr.mxu0 0.0
        %359 = vmatpush1.msra.mxu0 0.0
        %360 = vmatprep.subr.mxu0 0.0
        %361 = vmatpush1.msra.mxu0 0.0
        %362 = vmatprep.subr.mxu0 0.0
        %363 = vmatpush1.msra.mxu0 0.0
        %364 = vmatprep.subr.mxu0 0.0
        %365 = vmatpush1.msra.mxu0 0.0
        %366 = vmatprep.subr.mxu0 0.0
        %367 = vmatpush1.msra.mxu0 0.0
        %368 = vmatprep.subr.mxu0 0.0
        %369 = vmatpush1.msra.mxu0 0.0
        %370 = vmatprep.subr.mxu0 0.0
        %371 = vmatpush1.msra.mxu0 %v332
        %372 = vmatprep.subr.mxu0 0.0
        %373 = vmatpush2.msra.mxu0 0.0
        %374 = vmatprep.subr.mxu0 0.0
        %375 = vmatpush2.msra.mxu0 0.0
        %376 = vmatprep.subr.mxu0 0.0
        %377 = vmatpush2.msra.mxu0 0.0
        %378 = vmatprep.subr.mxu0 0.0
        %379 = vmatpush2.msra.mxu0 0.0
        %380 = vmatprep.subr.mxu0 0.0
        %381 = vmatpush2.msra.mxu0 0.0
        %382 = vmatprep.subr.mxu0 0.0
        %383 = vmatpush2.msra.mxu0 0.0
        %384 = vmatprep.subr.mxu0 0.0
        %385 = vmatpush2.msra.mxu0 0.0
        %386 = vmatprep.subr.mxu0 0.0
        %387 = vmatpush2.msra.mxu0 0.0
        %388 = vmatprep.subr.mxu0 0.0
        %389 = vmatpush2.msra.mxu0 0.0
        %390 = vmatprep.subr.mxu0 0.0
        %391 = vmatpush2.msra.mxu0 0.0
        %392 = vmatprep.subr.mxu0 0.0
        %393 = vmatpush2.msra.mxu0 0.0
        %394 = vmatprep.subr.mxu0 0.0
        %395 = vmatpush2.msra.mxu0 0.0
        %396 = vmatprep.subr.mxu0 0.0
        %397 = vmatpush2.msra.mxu0 0.0
        %398 = vmatprep.subr.mxu0 0.0
        %399 = vmatpush2.msra.mxu0 0.0
        %400 = vmatprep.subr.mxu0 0.0
        %401 = vmatpush2.msra.mxu0 0.0
        %402 = vmatprep.subr.mxu0 0.0
        %403 = vmatpush2.msra.mxu0 0.0
        %404 = vmatprep.mubr.f32.mxu0 0.0
        %405 = vmatmul.mubr.f32.gmra.mxu0 %v335
        %v406 = vpop.f32.mrf.mxu0
        %v407 = vadd.f32 0.0, %v406
        %v408 = vpop.f32.mrf.mxu0
        %409 = vmatprep.mubr.f32.mxu0 0.0
        %410 = vmatmul.mubr.f32.gmra.mxu0 %v338
        %v411 = vpop.f32.mrf.mxu0
        %v412 = vadd.f32 0.0, %v411
        %v413 = vpop.f32.mrf.mxu0
        %414 = vdwg.mxu0
        %vm415 = vcmask 293888
        %v417 = vsel %vm415, %v323, 0
        %v420 = vsel %vm415, %v324, 0
        %vm422 = vcmask 1043456
        %v424 = vsel %vm422, %v329, 0
        %426 = vmatprep.subr.mxu0 0.0
        %427 = vmatpush1.msra.mxu0 0.0
        %428 = vmatprep.subr.mxu0 0.0
        %429 = vmatpush1.msra.mxu0 0.0
        %430 = vmatprep.subr.mxu0 0.0
        %431 = vmatpush1.msra.mxu0 0.0
        %432 = vmatprep.subr.mxu0 0.0
        %433 = vmatpush1.msra.mxu0 0.0
        %434 = vmatprep.subr.mxu0 0.0
        %435 = vmatpush1.msra.mxu0 0.0
        %436 = vmatprep.subr.mxu0 0.0
        %437 = vmatpush1.msra.mxu0 0.0
        %438 = vmatprep.subr.mxu0 0.0
        %439 = vmatpush1.msra.mxu0 0.0
        %440 = vmatprep.subr.mxu0 0.0
        %441 = vmatpush1.msra.mxu0 0.0
        %442 = vmatprep.subr.mxu0 0.0
        %443 = vmatpush1.msra.mxu0 0.0
        %444 = vmatprep.subr.mxu0 0.0
        %445 = vmatpush1.msra.mxu0 0.0
        %446 = vmatprep.subr.mxu0 0.0
        %447 = vmatpush1.msra.mxu0 0.0
        %448 = vmatprep.subr.mxu0 0.0
        %449 = vmatpush1.msra.mxu0 %v424
        %450 = vmatprep.subr.mxu0 0.0
        %451 = vmatpush1.msra.mxu0 %v328
        %452 = vmatprep.subr.mxu0 0.0
        %453 = vmatpush1.msra.mxu0 %v327
        %454 = vmatprep.subr.mxu0 0.0
        %455 = vmatpush1.msra.mxu0 %v326
        %456 = vmatprep.subr.mxu0 0.0
        %457 = vmatpush1.msra.mxu0 %v325
        %458 = vmatprep.subr.mxu0 0.0
        %459 = vmatpush2.msra.mxu0 0.0
        %460 = vmatprep.subr.mxu0 0.0
        %461 = vmatpush2.msra.mxu0 0.0
        %462 = vmatprep.subr.mxu0 0.0
        %463 = vmatpush2.msra.mxu0 0.0
        %464 = vmatprep.subr.mxu0 0.0
        %465 = vmatpush2.msra.mxu0 0.0
        %466 = vmatprep.subr.mxu0 0.0
        %467 = vmatpush2.msra.mxu0 0.0
        %468 = vmatprep.subr.mxu0 0.0
        %469 = vmatpush2.msra.mxu0 0.0
        %470 = vmatprep.subr.mxu0 0.0
        %471 = vmatpush2.msra.mxu0 0.0
        %472 = vmatprep.subr.mxu0 0.0
        %473 = vmatpush2.msra.mxu0 0.0
        %474 = vmatprep.subr.mxu0 0.0
        %475 = vmatpush2.msra.mxu0 0.0
        %476 = vmatprep.subr.mxu0 0.0
        %477 = vmatpush2.msra.mxu0 0.0
        %478 = vmatprep.subr.mxu0 0.0
        %479 = vmatpush2.msra.mxu0 0.0
        %480 = vmatprep.subr.mxu0 0.0
        %481 = vmatpush2.msra.mxu0 0.0
        %482 = vmatprep.subr.mxu0 0.0
        %483 = vmatpush2.msra.mxu0 0.0
        %484 = vmatprep.subr.mxu0 0.0
        %485 = vmatpush2.msra.mxu0 0.0
        %486 = vmatprep.subr.mxu0 0.0
        %487 = vmatpush2.msra.mxu0 0.0
        %488 = vmatprep.subr.mxu0 0.0
        %489 = vmatpush2.msra.mxu0 0.0
        %490 = vmatprep.mubr.f32.mxu0 0.0
        %491 = vmatmul.mubr.f32.gmra.mxu0 %v417
        %v492 = vpop.f32.mrf.mxu0
        %v493 = vadd.f32 %v407, %v492
        %v494 = vpop.f32.mrf.mxu0
        %495 = vmatprep.mubr.f32.mxu0 0.0
        %496 = vmatmul.mubr.f32.gmra.mxu0 %v420
        %v497 = vpop.f32.mrf.mxu0
        %v498 = vadd.f32 %v412, %v497
        %v499 = vpop.f32.mrf.mxu0
        %500 = vdwg.mxu0
        %v501 = vld [vmem:[%s4] sm:$0xff]
        %v502 = vld [vmem:[%s4 + $0x8] sm:$0xff]
        %504 = vset.pattern.permute.xlu0 0
        %505 = vperm.xlu0 %504, %v501
        %v506 = vpop.permute.xlu0 %505
        %509 = vset.pattern.permute.xlu0 0
        %510 = vperm.xlu0 %509, %v502
        %v511 = vpop.permute.xlu0 %510
        %v513 = vadd.f32 %v493, %v506
        %v514 = vadd.f32 %v498, %v511
        %v515 = vmax.f32 %v513, 0.0
        %v516 = vmax.f32 %v514, 0.0
        %v517 = vmin.f32 %v515, 6.0
        %v518 = vmin.f32 %v516, 6.0
        %519 = vst [vmem:[%s314] sm:$0xff] %v517
        %520 = vst [vmem:[%s314 + $0x8] sm:$0xff] %v518
        %s521 = sand.u32 %s160, 1
        %s522 = scalar_lea.sflag [#allocation4], %s521
        %s523 = sand.u32 %s160, 1
        %s524 = smul.addr %s523, 16
        %s525 = scalar_lea.vmem [#allocation3], %s524
        // Predicated region
        $region79: #{tpu_custom_call.1} parent=73 // pred_check
          %p526 = pneg %p170
        $region80: #{tpu_custom_call.1} parent=73 // pred_check_branch
          %528 = sbr.rel (%p526) target = $region82
        $region81: #{tpu_custom_call.1} parent=73 // pred_region
          %s530 = ssub.s32 256, 256
          %531 = vsyncadd %s522, %s530
          %s532 = smul.addr %s23, 4
          %s533 = sadd.s32 %s24, %s532
          %s534 = smul.addr %s533, 128
          %s535 = scalar_lea.hbm %s5, %s534
          %s536 = sshll.u32 %s525, 4
          %s537 = int_to_ptr.vmem [resolvable:$true] %s536
          %542 = dma.vmem_to_hbm [thread:$0]  %s537, 256, %s535, %s522, 128, 256, 8
        $region82: #{tpu_custom_call.1} parent=73 // pred_fallthru
          _
      $region74: #{tpu_custom_call.1} parent=5 // pred_fallthru
        _
      %p543 = scmp.le.s32.totalorder 2, %s14
      // Predicated region
      $region83: #{tpu_custom_call.1} parent=5 // pred_check
        %p544 = pneg %p543
      $region84: #{tpu_custom_call.1} parent=5 // pred_check_branch
        %546 = sbr.rel (%p544) target = $region86
      $region85: #{tpu_custom_call.1} parent=5 // pred_region
        %s547 = ssub.s32 %s14, 2
        // Predicated region
        $region87: #{tpu_custom_call.1} parent=85 // pred_check
          %p548 = pneg %p176
        $region88: #{tpu_custom_call.1} parent=85 // pred_check_branch
          %550 = sbr.rel (%p548) target = $region90
        $region89: #{tpu_custom_call.1} parent=85 // pred_region
          %s551 = sand.u32 %s161, 1
          %s552 = scalar_lea.sflag [#allocation4], %s551
          %s553 = sand.u32 %s161, 1
          %s554 = smul.addr %s553, 16
          %s555 = scalar_lea.vmem [#allocation3], %s554
          %556 = dma.done %s552, 256
        $region90: #{tpu_custom_call.1} parent=85 // pred_fallthru
          _
      $region86: #{tpu_custom_call.1} parent=5 // pred_fallthru
        _
    $region6: #{tpu_custom_call.1} parent=1 // loop_footer
      %s18 = sadd.s32 1, %s14
    $region7: #{tpu_custom_call.1} parent=1 // loop_footer_branch
      %13 = sbr.rel target = $region3
    $region8: #{tpu_custom_call.1} parent=1 // loop_exit
      _
    %557 = vsyncpa [#allocation4], 1
    %s558 = scalar_lea.sflag [#allocation4], 1
    %559 = vsyncpa %s558, 1

</llo_original>
